<compile_context>
chip_gen: v5e
topology: v5e:2x2
jax: 0.10.0
libtpu: 0.0.40
codegen_flags: <defaults>
</compile_context>

<pallas_src>
import functools

import jax
import jax.numpy as jnp
from jax.experimental import pallas as pl
from jax.experimental.pallas import tpu as pltpu


def _round_up(v, m):
    return ((v + m - 1) // m) * m


def _linear_kernel(x_ref, w_ref, b_ref, o_ref, acc_ref):
    """One (tm, tn) output tile; K is reduced over grid axis 2."""
    k = pl.program_id(2)

    @pl.when(k == 0)
    def _():
        acc_ref[...] = jnp.zeros_like(acc_ref)

    acc_ref[...] += jnp.dot(
        x_ref[...], w_ref[...], preferred_element_type=jnp.float32
    )

    @pl.when(k == pl.num_programs(2) - 1)
    def _():
        o_ref[...] = (acc_ref[...] + b_ref[...]).astype(o_ref.dtype)


@functools.partial(
    jax.jit, static_argnames=("bp", "kp", "np_", "tm", "tn", "tk", "out_b", "out_n")
)
def _linear_forward(x, w_t, b_p, *, bp, kp, np_, tm, tn, tk, out_b, out_n):
    B, K = x.shape
    # Single fused pad (K -> kp, B -> bp); at B=8, K=3 this is tiny and fused
    # by XLA into the pallas_call's input.
    x_p = jnp.pad(x, ((0, bp - B), (0, kp - K)))

    out_p = pl.pallas_call(
        _linear_kernel,
        out_shape=jax.ShapeDtypeStruct((bp, np_), jnp.float32),
        grid=(bp // tm, np_ // tn, kp // tk),
        in_specs=[
            pl.BlockSpec((tm, tk), lambda i, j, k: (i, k)),
            pl.BlockSpec((tk, tn), lambda i, j, k: (k, j)),
            pl.BlockSpec((1, tn), lambda i, j, k: (0, j)),
        ],
        out_specs=pl.BlockSpec((tm, tn), lambda i, j, k: (i, j)),
        scratch_shapes=[pltpu.VMEM((tm, tn), jnp.float32)],
        compiler_params=pltpu.CompilerParams(
            dimension_semantics=("parallel", "parallel", "arbitrary")
        ),
    )(x_p, w_t, b_p)

    return out_p[:out_b, :out_n]


class NeuralNetworkPallas:
    """Mirror of PyTorch NeuralNetwork(input_size=3, output_size=2):
    single nn.Linear with weight filled with 0.1 and bias 0.0."""

    def __init__(self, input_size=3, output_size=2):
        self.input_size = input_size
        self.output_size = output_size

        # Deterministic init matching the PyTorch module.
        self.weight = jnp.full((output_size, input_size), 0.1, jnp.float32)
        self.bias = jnp.zeros((output_size,), jnp.float32)

        # --- One-time padding / transpose (hoisted out of the forward) ---
        # Tile plan: K-tile <= 512, N-tile <= 256; pad padded dims to tile
        # multiples so the grid divides evenly.
        kp = _round_up(input_size, 128)
        self._tk = min(kp, 512)
        self._kp = _round_up(kp, self._tk)

        np_ = _round_up(output_size, 128)
        self._tn = min(np_, 256)
        self._np = _round_up(np_, self._tn)

        # Weight stored transposed + zero-padded: (Kp, Np).
        self.w_t = (
            jnp.zeros((self._kp, self._np), jnp.float32)
            .at[:input_size, :output_size]
            .set(self.weight.T)
        )
        # Bias stored padded as a (1, Np) row for lane-aligned broadcast.
        self.b_p = (
            jnp.zeros((1, self._np), jnp.float32)
            .at[0, :output_size]
            .set(self.bias)
        )

    def __call__(self, x):
        B, K = x.shape
        assert K == self.input_size

        bp = _round_up(max(B, 8), 8)
        tm = min(bp, 256)
        bp = _round_up(bp, tm)

        return _linear_forward(
            x,
            self.w_t,
            self.b_p,
            bp=bp,
            kp=self._kp,
            np_=self._np,
            tm=tm,
            tn=self._tn,
            tk=self._tk,
            out_b=B,
            out_n=self.output_size,
        )


if __name__ == "__main__":
    key = jax.random.PRNGKey(0)
    batch, input_size, output_size = 8, 3, 2

    x = jax.random.normal(key, (batch, input_size), jnp.float32)

    model = NeuralNetworkPallas(input_size=input_size, output_size=output_size)
    y = model(x)
    y = jax.block_until_ready(y)

    # Reference check against plain JAX (same math as nn.Linear forward).
    y_ref = x @ model.weight.T + model.bias
    assert y.shape == (batch, output_size)
    assert jnp.allclose(y, y_ref, atol=1e-5), "mismatch vs reference"

    print("KERNEL_OK")
</pallas_src>

<mosaic_0001>
module attributes {stable_mosaic.version = 11 : i64} {
  func.func @_linear_kernel(%arg0: i32, %arg1: i32, %arg2: i32, %arg3: memref<8x128xf32, #tpu.memory_space<vmem>>, %arg4: memref<128x128xf32, #tpu.memory_space<vmem>>, %arg5: memref<1x128xf32, #tpu.memory_space<vmem>>, %arg6: memref<8x128xf32, #tpu.memory_space<vmem>>, %arg7: memref<8x128xf32, #tpu.memory_space<vmem>>) attributes {dimension_semantics = [#tpu.dimension_semantics<parallel>, #tpu.dimension_semantics<parallel>, #tpu.dimension_semantics<arbitrary>], iteration_bounds = array<i64: 1, 1, 1>, scalar_prefetch = 0 : i64, scratch_operands = 1 : i64, tpu.core_type = #tpu.core_type<tc>, window_params = [{transform_indices = @transform_0, window_bounds = array<i64: 8, 128>}, {transform_indices = @transform_1, window_bounds = array<i64: 128, 128>}, {transform_indices = @transform_2, window_bounds = array<i64: 1, 128>}, {transform_indices = @transform_3, window_bounds = array<i64: 8, 128>}]} {
    %c0_i32 = arith.constant 0 : i32
    %0 = arith.cmpi eq, %arg2, %c0_i32 : i32
    %1 = arith.extui %0 : i1 to i32
    %c0_i32_0 = arith.constant 0 : i32
    %2 = arith.cmpi ne, %1, %c0_i32_0 : i32
    scf.if %2 {
      %cst_10 = arith.constant 0.000000e+00 : f32
      %12 = vector.broadcast %cst_10 : f32 to vector<8x128xf32>
      %c0_11 = arith.constant 0 : index
      %c0_12 = arith.constant 0 : index
      %13 = vector.load %arg7[%c0_11, %c0_12] : memref<8x128xf32, #tpu.memory_space<vmem>>, vector<8x128xf32>
      tpu.vector_store %arg7[%c0_11, %c0_12], %12 {strides = array<i32>} : memref<8x128xf32, #tpu.memory_space<vmem>>, vector<8x128xf32>,
    } else {
    }
    %c0 = arith.constant 0 : index
    %c0_1 = arith.constant 0 : index
    %3 = vector.load %arg7[%c0, %c0_1] : memref<8x128xf32, #tpu.memory_space<vmem>>, vector<8x128xf32>
    %c0_2 = arith.constant 0 : index
    %c0_3 = arith.constant 0 : index
    %4 = vector.load %arg3[%c0_2, %c0_3] : memref<8x128xf32, #tpu.memory_space<vmem>>, vector<8x128xf32>
    %c0_4 = arith.constant 0 : index
    %c0_5 = arith.constant 0 : index
    %5 = vector.load %arg4[%c0_4, %c0_5] : memref<128x128xf32, #tpu.memory_space<vmem>>, vector<128x128xf32>
    %cst = arith.constant dense<0.000000e+00> : vector<8x128xf32>
    %6 = tpu.matmul %4, %5, %cst {dimension_numbers = #tpu.dot_dimension_numbers<[1], [0], [0], [1], [0, 0, 1, 1], [], []>} : vector<8x128xf32>, vector<128x128xf32>, vector<8x128xf32> -> vector<8x128xf32>
    %7 = arith.addf %3, %6 : vector<8x128xf32>
    %c0_6 = arith.constant 0 : index
    %c0_7 = arith.constant 0 : index
    %8 = vector.load %arg7[%c0_6, %c0_7] : memref<8x128xf32, #tpu.memory_space<vmem>>, vector<8x128xf32>
    tpu.vector_store %arg7[%c0_6, %c0_7], %7 {strides = array<i32>} : memref<8x128xf32, #tpu.memory_space<vmem>>, vector<8x128xf32>,
    %c0_i32_8 = arith.constant 0 : i32
    %9 = arith.cmpi eq, %arg2, %c0_i32_8 : i32
    %10 = arith.extui %9 : i1 to i32
    %c0_i32_9 = arith.constant 0 : i32
    %11 = arith.cmpi ne, %10, %c0_i32_9 : i32
    scf.if %11 {
      %c0_10 = arith.constant 0 : index
      %c0_11 = arith.constant 0 : index
      %12 = vector.load %arg7[%c0_10, %c0_11] : memref<8x128xf32, #tpu.memory_space<vmem>>, vector<8x128xf32>
      %c0_12 = arith.constant 0 : index
      %c0_13 = arith.constant 0 : index
      %13 = vector.load %arg5[%c0_12, %c0_13] : memref<1x128xf32, #tpu.memory_space<vmem>>, vector<1x128xf32>
      %14 = vector.broadcast %13 : vector<1x128xf32> to vector<8x128xf32>
      %15 = arith.addf %12, %14 : vector<8x128xf32>
      %c0_14 = arith.constant 0 : index
      %c0_15 = arith.constant 0 : index
      %16 = vector.load %arg6[%c0_14, %c0_15] : memref<8x128xf32, #tpu.memory_space<vmem>>, vector<8x128xf32>
      tpu.vector_store %arg6[%c0_14, %c0_15], %15 {strides = array<i32>} : memref<8x128xf32, #tpu.memory_space<vmem>>, vector<8x128xf32>,
    } else {
    }
    return
  }
  func.func @transform_0(%arg0: i32, %arg1: i32, %arg2: i32) -> (i32, i32) {
    %c0_i32 = arith.constant 0 : i32
    return %arg0, %arg2 : i32, i32
  }
  func.func @transform_1(%arg0: i32, %arg1: i32, %arg2: i32) -> (i32, i32) {
    %c0_i32 = arith.constant 0 : i32
    return %arg2, %arg1 : i32, i32
  }
  func.func @transform_2(%arg0: i32, %arg1: i32, %arg2: i32) -> (i32, i32) {
    %c0_i32 = arith.constant 0 : i32
    %c0_i32_0 = arith.constant 0 : i32
    return %c0_i32, %arg1 : i32, i32
  }
  func.func @transform_3(%arg0: i32, %arg1: i32, %arg2: i32) -> (i32, i32) {
    %c0_i32 = arith.constant 0 : i32
    return %arg0, %arg1 : i32, i32
  }
}

</mosaic_0001>

<llo_original>
// kernel: _linear_forward.1
$region0: #{_linear_forward.1}
  #allocation0 [shape = 'u32[]', space=smem, size = 0x4, offset = 0x4, fixed_abs, tag = 'smem constant byte address 0x4 - core index']
  #allocation1 [shape = 'u32[72,128]{1,0:T(1,128)}', space=vmem, size = 0x9000, scoped, tag = 'internal scratch']
  #allocation2 [shape = 'f32[8,128]{1,0:T(8,128)}', space=vmem, size = 0x1000, scoped, tag = 'scratch operand']
  %s0 = inlined_call_operand.vmem [shape: f32[8,128], index: 0, kind: input, shape index: {}]
  %s1 = inlined_call_operand.hbm [shape: f32[128,128], index: 1, kind: input, shape index: {}]
  %s2 = inlined_call_operand.vmem [shape: f32[1,128], index: 2, kind: input, shape index: {}]
  %s3 = inlined_call_operand.vmem [shape: f32[8,128], index: 3, kind: output, shape index: {}]
  %s4 = sld [smem:[#allocation0]]
  $region34: #{_linear_forward.1} parent=0
    _
  %s6 = ssub.s32 1, %s4
  %s7 = scalar_select 0, %s6, %s4
  $region1: #{_linear_forward.1} parent=0
    #allocation3 [shape = 'u8[65536]{0}', space=vmem, size = 0x10000, scoped, tag = 'input window, operand 1, single buffered']
    #allocation4 [shape = 's32[1]{0}', space=sflag, size = 0x4, scoped, tag = 'scoped memory for _linear_forward.1']
    %8 = vsyncpa [#allocation4], 0
    // Predicated region
    $region2: #{_linear_forward.1} parent=1 // pred_check
      _
    $region3: #{_linear_forward.1} parent=1 // pred_check_branch
      %10 = sbr.rel (0) target = $region5
    $region4: #{_linear_forward.1} parent=1 // pred_region
      _
    $region5: #{_linear_forward.1} parent=1 // pred_fallthru
      _
    // Predicated region
    $region6: #{_linear_forward.1} parent=1 // pred_check
      _
    $region7: #{_linear_forward.1} parent=1 // pred_check_branch
      %12 = sbr.rel (0) target = $region9
    $region8: #{_linear_forward.1} parent=1 // pred_region
      %14 = vsyncadd [#allocation4], 0
      %s15 = sshll.u32 %s1, 4
      %s16 = int_to_ptr.hbm [resolvable:$true] %s15
      %s17 = sshll.u32 [#allocation3], 4
      %s18 = int_to_ptr.vmem [resolvable:$true] %s17
      %23 = dma.hbm_to_vmem [thread:$0]  %s16, 2048, %s18, [#allocation4], 128, 128, 8
    $region9: #{_linear_forward.1} parent=1 // pred_fallthru
      _
    // Predicated region
    $region10: #{_linear_forward.1} parent=1 // pred_check
      _
    $region11: #{_linear_forward.1} parent=1 // pred_check_branch
      %25 = sbr.rel (0) target = $region13
    $region12: #{_linear_forward.1} parent=1 // pred_region
      _
    $region13: #{_linear_forward.1} parent=1 // pred_fallthru
      _
    // Predicated region
    $region14: #{_linear_forward.1} parent=1 // pred_check
      _
    $region15: #{_linear_forward.1} parent=1 // pred_check_branch
      %27 = sbr.rel (0) target = $region17
    $region16: #{_linear_forward.1} parent=1 // pred_region
      %29 = dma.done [#allocation4], 2048
    $region17: #{_linear_forward.1} parent=1 // pred_fallthru
      _
    %p30 = scmp.eq.s32.totalorder 0, 0
    // Predicated region
    $region18: #{_linear_forward.1} parent=1 // pred_check
      %p31 = pneg %p30
    $region19: #{_linear_forward.1} parent=1 // pred_check_branch
      %33 = sbr.rel (%p31) target = $region21
    $region20: #{_linear_forward.1} parent=1 // pred_region
      %34 = vst [vmem:[#allocation2] sm:$0xff] 0.0
    $region21: #{_linear_forward.1} parent=1 // pred_fallthru
      _
    %v35 = vld [vmem:[#allocation2] sm:$0xff]
    %v36 = vld [vmem:[%s0] sm:$0xff]
    %v37 = vld [vmem:[#allocation3] sm:$0xff]
    %v38 = vld [vmem:[#allocation3 + $0x8] sm:$0xff]
    %v39 = vld [vmem:[#allocation3 + $0x10] sm:$0xff]
    %v40 = vld [vmem:[#allocation3 + $0x18] sm:$0xff]
    %v41 = vld [vmem:[#allocation3 + $0x20] sm:$0xff]
    %v42 = vld [vmem:[#allocation3 + $0x28] sm:$0xff]
    %v43 = vld [vmem:[#allocation3 + $0x30] sm:$0xff]
    %v44 = vld [vmem:[#allocation3 + $0x38] sm:$0xff]
    %v45 = vld [vmem:[#allocation3 + $0x40] sm:$0xff]
    %v46 = vld [vmem:[#allocation3 + $0x48] sm:$0xff]
    %v47 = vld [vmem:[#allocation3 + $0x50] sm:$0xff]
    %v48 = vld [vmem:[#allocation3 + $0x58] sm:$0xff]
    %v49 = vld [vmem:[#allocation3 + $0x60] sm:$0xff]
    %v50 = vld [vmem:[#allocation3 + $0x68] sm:$0xff]
    %v51 = vld [vmem:[#allocation3 + $0x70] sm:$0xff]
    %v52 = vld [vmem:[#allocation3 + $0x78] sm:$0xff]
    %53 = vmatpush.msra.mxu0 %v52
    %54 = vmatpush.msra.mxu0 %v51
    %55 = vmatpush.msra.mxu0 %v50
    %56 = vmatpush.msra.mxu0 %v49
    %57 = vmatpush.msra.mxu0 %v48
    %58 = vmatpush.msra.mxu0 %v47
    %59 = vmatpush.msra.mxu0 %v46
    %60 = vmatpush.msra.mxu0 %v45
    %61 = vmatpush.msra.mxu0 %v44
    %62 = vmatpush.msra.mxu0 %v43
    %63 = vmatpush.msra.mxu0 %v42
    %64 = vmatpush.msra.mxu0 %v41
    %65 = vmatpush.msra.mxu0 %v40
    %66 = vmatpush.msra.mxu0 %v39
    %67 = vmatpush.msra.mxu0 %v38
    %68 = vmatpush.msra.mxu0 %v37
    %69 = vmatmul.f32.gmra.mxu0 %v36
    %v70 = vpop.f32.mrf.mxu0
    %v71 = vadd.f32 0.0, %v70
    %72 = vdwg.mxu0
    %v73 = vadd.f32 %v35, %v71
    %74 = vst [vmem:[#allocation2] sm:$0xff] %v73
    // Predicated region
    $region22: #{_linear_forward.1} parent=1 // pred_check
      %p75 = pneg %p30
    $region23: #{_linear_forward.1} parent=1 // pred_check_branch
      %77 = sbr.rel (%p75) target = $region25
    $region24: #{_linear_forward.1} parent=1 // pred_region
      %v78 = vld [vmem:[#allocation2] sm:$0xff]
      %v79 = vld [vmem:[%s2] sm:$0x1]
      %v81 = vperm.slane %v79, 0
      %v83 = vadd.f32 %v78, %v81
      %84 = vst [vmem:[%s3] sm:$0xff] %v83
    $region25: #{_linear_forward.1} parent=1 // pred_fallthru
      _
    // Predicated region
    $region26: #{_linear_forward.1} parent=1 // pred_check
      _
    $region27: #{_linear_forward.1} parent=1 // pred_check_branch
      %86 = sbr.rel (0) target = $region29
    $region28: #{_linear_forward.1} parent=1 // pred_region
      _
    $region29: #{_linear_forward.1} parent=1 // pred_fallthru
      _
    // Predicated region
    $region30: #{_linear_forward.1} parent=1 // pred_check
      _
    $region31: #{_linear_forward.1} parent=1 // pred_check_branch
      %88 = sbr.rel (0) target = $region33
    $region32: #{_linear_forward.1} parent=1 // pred_region
      _
    $region33: #{_linear_forward.1} parent=1 // pred_fallthru
      _
    %89 = vsyncpa [#allocation4], 1

</llo_original>
